<compile_context>
chip_gen: v6e
topology: v6e:2x2x1
jax: 0.10.0
libtpu: 0.0.40
codegen_flags: <defaults>
</compile_context>

<pallas_src>
import jax
import jax.numpy as jnp
import numpy as np
from jax.experimental import pallas as pl
from jax.experimental.pallas import tpu as pltpu


def make_kernel(k):
    """Same semantics as the PyTorch make_kernel: outer-product + normalize."""
    k = np.asarray(k, dtype=np.float32)
    if k.ndim == 1:
        k = k[None, :] * k[:, None]
    k = k / k.sum()
    return k


def _round_up(a, b):
    return (a + b - 1) // b * b


def _vmem_limit_bytes():
    """Per-chip scoped-VMEM limit (~75% of physical, capped)."""
    try:
        cap = int(pltpu.get_tpu_info().vmem_capacity_bytes)
        return min((cap * 3) // 4, 112 * 1024 * 1024)
    except Exception:
        return 48 * 1024 * 1024   # safe on every generation (<= v7x's 64 MiB)


def _make_taps(blur_kernel, upsample_factor):
    """Compile-time FIR taps (flipped, normalized, gain folded in)."""
    k1 = np.asarray(blur_kernel, dtype=np.float32)
    separable = (k1.ndim == 1)
    gain = float(upsample_factor ** 2) if upsample_factor > 1 else 1.0
    k2 = make_kernel(blur_kernel) * gain
    # upfirdn2d flips the kernel then cross-correlates == correlate with flip.
    k2f = np.ascontiguousarray(k2[::-1, ::-1])
    kh, kw = k2f.shape
    if separable:
        k1r = k1[::-1]
        norm = float(k1.sum())
        taps_h = tuple(float(v) / norm for v in k1r)            # column pass
        taps_w = tuple(float(v) * gain / norm for v in k1r)     # row pass
        taps2d = None
    else:
        taps_h = taps_w = None
        taps2d = tuple(tuple(float(k2f[i, j]) for j in range(kw)) for i in range(kh))
    return separable, kh, kw, taps_h, taps_w, taps2d


def blur(x, blur_kernel=(1, 3, 3, 1), pad=(2, 1), upsample_factor=1):
    """Forward pass of Blur: upfirdn2d(x, make_kernel(blur_kernel)*gain, pad=pad).

    x: (N, C, H, W). Returns (N, C, H+pad0+pad1-kh+1, W+pad0+pad1-kw+1).
    """
    separable, kh, kw, taps_h, taps_w, taps2d = _make_taps(blur_kernel, upsample_factor)

    pad0, pad1 = int(pad[0]), int(pad[1])
    p0, p1 = max(pad0, 0), max(pad1, 0)
    c0, c1 = max(-pad0, 0), max(-pad1, 0)

    N, C, H, W = x.shape
    P = N * C
    x_dtype = x.dtype
    itm = jnp.dtype(x_dtype).itemsize

    x3 = x.reshape(P, H, W)                       # free reshape (same HBM layout)
    if c0 or c1:                                   # negative pad == crop (rare)
        x3 = x3[:, c0:H - c1, c0:W - c1]
    Hc, Wc = int(x3.shape[1]), int(x3.shape[2])

    Hp, Wp = Hc + p0 + p1, Wc + p0 + p1
    Ho, Wo = Hp - kh + 1, Wp - kw + 1
    assert Ho > 0 and Wo > 0, "pad too small for kernel size"

    vmem_limit = _vmem_limit_bytes()
    budget = (vmem_limit * 3) // 5                 # headroom for compiler temporaries

    compiler_params = pltpu.CompilerParams(
        dimension_semantics=("parallel",),
        vmem_limit_bytes=vmem_limit,
    )

    # ------------------------------------------------------------------ #
    # Path selection.
    # ------------------------------------------------------------------ #
    lane_block = 128
    P_pad = _round_up(P, lane_block)
    w0_cl = _round_up(p0, 8) if p0 > 0 else 0      # sublane-aligned interior col
    Ws_cl = w0_cl + Wc + p1
    est_cl = (2 * Hc * Wc * itm + 2 * Ho * Wo * itm
              + Hp * Ws_cl * 4 + (Hp * Wo + Ho * Wo) * 4) * lane_block
    use_channels_last = (Wc < 128) and (P_pad <= 2 * P) and (est_cl <= budget)

    if use_channels_last:
        # -------- channels-last (H, W, P): lanes carry the N*C planes ----
        Hs, Ws = Hp, Ws_cl
        w0, dw = w0_cl, w0_cl - p0

        def kernel_cl(x_ref, o_ref, xpad_ref):
            # x_ref: (Hc, Wc, LB)  o_ref: (Ho, Wo, LB)  xpad_ref: (Hs, Ws, LB) f32
            # Zero only the halo strips; the interior is always overwritten.
            if p0 > 0:
                xpad_ref[0:p0, :, :] = jnp.zeros((p0, Ws, lane_block), jnp.float32)
                xpad_ref[p0:p0 + Hc, dw:w0, :] = jnp.zeros((Hc, p0, lane_block), jnp.float32)
            if p1 > 0:
                xpad_ref[p0 + Hc:Hp, :, :] = jnp.zeros((p1, Ws, lane_block), jnp.float32)
                xpad_ref[p0:p0 + Hc, w0 + Wc:w0 + Wc + p1, :] = jnp.zeros(
                    (Hc, p1, lane_block), jnp.float32)
            xpad_ref[p0:p0 + Hc, w0:w0 + Wc, :] = x_ref[...].astype(jnp.float32)

            if separable:
                # row pass: 1D FIR along W (sublane-offset slices)
                row = taps_w[0] * xpad_ref[:, dw:dw + Wo, :]
                for j in range(1, kw):
                    row = row + taps_w[j] * xpad_ref[:, dw + j:dw + j + Wo, :]
                # column pass: 1D FIR along H (leading-dim offsets)
                acc = taps_h[0] * row[0:Ho, :, :]
                for i in range(1, kh):
                    acc = acc + taps_h[i] * row[i:i + Ho, :, :]
            else:
                acc = None
                for i in range(kh):
                    for j in range(kw):
                        t = taps2d[i][j] * xpad_ref[i:i + Ho, dw + j:dw + j + Wo, :]
                        acc = t if acc is None else acc + t
            o_ref[...] = acc.astype(o_ref.dtype)

        xt = jnp.transpose(x3, (1, 2, 0))          # (Hc, Wc, P); only path with copies
        if P_pad != P:
            xt = jnp.pad(xt, ((0, 0), (0, 0), (0, P_pad - P)))

        out = pl.pallas_call(
            kernel_cl,
            out_shape=jax.ShapeDtypeStruct((Ho, Wo, P_pad), x_dtype),
            grid_spec=pltpu.PrefetchScalarGridSpec(
                num_scalar_prefetch=0,
                grid=(P_pad // lane_block,),
                in_specs=[pl.BlockSpec((Hc, Wc, lane_block), lambda p: (0, 0, p))],
                out_specs=pl.BlockSpec((Ho, Wo, lane_block), lambda p: (0, 0, p)),
                scratch_shapes=[pltpu.VMEM((Hs, Ws, lane_block), jnp.float32)],
            ),
            compiler_params=compiler_params,
        )(xt)
        if P_pad != P:
            out = out[:, :, :P]
        return jnp.transpose(out, (2, 0, 1)).reshape(N, C, Ho, Wo)

    # -------- W-on-lanes (P, H, W): no wrapper transposes ----------------
    h0 = _round_up(p0, 8) if p0 > 0 else 0         # sublane-aligned interior row
    dh = h0 - p0
    Hs, Ws = h0 + Hc + p1, Wp

    per_plane = (2 * Hc * Wc * itm + 2 * Ho * Wo * itm
                 + Hs * Ws * 4 + (Hp * Wo + Ho * Wo) * 4)
    tp_cap = max(1, min(budget // max(per_plane, 1), P))
    if P >= 16:
        tp_cap = min(tp_cap, max(8, P // 8))       # >=8 grid steps: pipelining + megacore
    elif P >= 2:
        tp_cap = min(tp_cap, max(1, P // 2))       # at least 2 grid steps
    TP = 1
    for cand in range(int(tp_cap), 0, -1):         # largest divisor of P <= tp_cap
        if P % cand == 0:
            TP = cand
            break
    # TODO(synk): if even TP=1 exceeds the VMEM budget (tiny N*C at extreme H*W),
    # add an H-strip grid axis with a kh-1 row halo.

    def kernel_wl(x_ref, o_ref, xpad_ref):
        # x_ref: (TP, Hc, Wc)  o_ref: (TP, Ho, Wo)  xpad_ref: (TP, Hs, Ws) f32
        if p0 > 0:
            xpad_ref[:, dh:h0, :] = jnp.zeros((TP, p0, Ws), jnp.float32)
            xpad_ref[:, h0:h0 + Hc, 0:p0] = jnp.zeros((TP, Hc, p0), jnp.float32)
        if p1 > 0:
            xpad_ref[:, h0 + Hc:h0 + Hc + p1, :] = jnp.zeros((TP, p1, Ws), jnp.float32)
            xpad_ref[:, h0:h0 + Hc, p0 + Wc:Wp] = jnp.zeros((TP, Hc, p1), jnp.float32)
        xpad_ref[:, h0:h0 + Hc, p0:p0 + Wc] = x_ref[...].astype(jnp.float32)

        if separable:
            # row pass: 1D FIR along W (lane-offset slices; XLU realign is cheap here)
            row = taps_w[0] * xpad_ref[:, dh:dh + Hp, 0:Wo]
            for j in range(1, kw):
                row = row + taps_w[j] * xpad_ref[:, dh:dh + Hp, j:j + Wo]
            # column pass: 1D FIR along H (sublane-offset slices)
            acc = taps_h[0] * row[:, 0:Ho, :]
            for i in range(1, kh):
                acc = acc + taps_h[i] * row[:, i:i + Ho, :]
        else:
            acc = None
            for i in range(kh):
                for j in range(kw):
                    t = taps2d[i][j] * xpad_ref[:, dh + i:dh + i + Ho, j:j + Wo]
                    acc = t if acc is None else acc + t
        o_ref[...] = acc.astype(o_ref.dtype)

    out = pl.pallas_call(
        kernel_wl,
        out_shape=jax.ShapeDtypeStruct((P, Ho, Wo), x_dtype),
        grid_spec=pltpu.PrefetchScalarGridSpec(
            num_scalar_prefetch=0,
            grid=(P // TP,),
            in_specs=[pl.BlockSpec((TP, Hc, Wc), lambda p: (p, 0, 0))],
            out_specs=pl.BlockSpec((TP, Ho, Wo), lambda p: (p, 0, 0)),
            scratch_shapes=[pltpu.VMEM((TP, Hs, Ws), jnp.float32)],
        ),
        compiler_params=compiler_params,
    )(x3)
    return out.reshape(N, C, Ho, Wo)


def _reference_blur(x, blur_kernel=(1, 3, 3, 1), pad=(2, 1), upsample_factor=1):
    """Pure-JAX reference (upfirdn2d_native math, NCHW) for correctness checks."""
    k = make_kernel(blur_kernel)
    if upsample_factor > 1:
        k = k * (upsample_factor ** 2)
    kf = np.ascontiguousarray(k[::-1, ::-1])
    kh, kw = kf.shape
    pad0, pad1 = int(pad[0]), int(pad[1])
    N, C, H, W = x.shape
    xf = x.reshape(N * C, H, W).astype(jnp.float32)
    xf = jnp.pad(xf, ((0, 0),
                      (max(pad0, 0), max(pad1, 0)),
                      (max(pad0, 0), max(pad1, 0))))
    xf = xf[:, max(-pad0, 0): xf.shape[1] - max(-pad1, 0),
               max(-pad0, 0): xf.shape[2] - max(-pad1, 0)]
    Hp, Wp = xf.shape[1], xf.shape[2]
    Ho, Wo = Hp - kh + 1, Wp - kw + 1
    acc = jnp.zeros((N * C, Ho, Wo), jnp.float32)
    for i in range(kh):
        for j in range(kw):
            acc = acc + float(kf[i, j]) * xf[:, i:i + Ho, j:j + Wo]
    return acc.reshape(N, C, Ho, Wo).astype(x.dtype)


if __name__ == "__main__":
    def check(x, **kw):
        out = jax.block_until_ready(blur(x, **kw))
        ref = jax.block_until_ready(_reference_blur(x, **kw))
        assert out.shape == ref.shape, (out.shape, ref.shape)
        err = float(np.max(np.abs(np.asarray(out) - np.asarray(ref))))
        assert np.allclose(np.asarray(out), np.asarray(ref), atol=1e-5, rtol=1e-5), err

    # Config 1: canonical StyleGAN2 Blur ([1,3,3,1], pad=(2,1), up=2), small shape.
    # Tiny N*C and small W -> exercises the W-on-lanes path with TP>1 / 2 grid steps.
    x1 = jax.random.normal(jax.random.PRNGKey(0), (2, 4, 16, 16), dtype=jnp.float32)
    check(x1, blur_kernel=(1, 3, 3, 1), pad=(2, 1), upsample_factor=2)

    # Config 2: many planes, tiny W -> exercises the channels-last (P-on-lanes) path.
    x2 = jax.random.normal(jax.random.PRNGKey(1), (2, 64, 8, 8), dtype=jnp.float32)
    check(x2, blur_kernel=(1, 3, 3, 1), pad=(2, 1), upsample_factor=1)

    # Config 3: lane-dense W (128) -> exercises the transpose-free W-on-lanes path.
    x3 = jax.random.normal(jax.random.PRNGKey(2), (1, 2, 8, 128), dtype=jnp.float32)
    check(x3, blur_kernel=(1, 3, 3, 1), pad=(2, 1), upsample_factor=1)

    print("KERNEL_OK")
</pallas_src>

<mosaic_0001>
module attributes {stable_mosaic.version = 11 : i64} {
  func.func @kernel_wl(%arg0: i32, %arg1: memref<4x16x16xf32, #tpu.memory_space<vmem>>, %arg2: memref<4x16x16xf32, #tpu.memory_space<vmem>>, %arg3: memref<4x25x19xf32, #tpu.memory_space<vmem>>) attributes {dimension_semantics = [#tpu.dimension_semantics<parallel>], iteration_bounds = array<i64: 2>, scalar_prefetch = 0 : i64, scratch_operands = 1 : i64, tpu.core_type = #tpu.core_type<tc>, window_params = [{transform_indices = @transform_0, window_bounds = array<i64: 4, 16, 16>}, {transform_indices = @transform_1, window_bounds = array<i64: 4, 16, 16>}]} {
    %cst = arith.constant 0.000000e+00 : f32
    %0 = vector.broadcast %cst : f32 to vector<4x2x19xf32>
    %c0 = arith.constant 0 : index
    %c6 = arith.constant 6 : index
    %c0_0 = arith.constant 0 : index
    %1 = vector.load %arg3[%c0, %c6, %c0_0] : memref<4x25x19xf32, #tpu.memory_space<vmem>>, vector<4x2x19xf32>
    tpu.vector_store %arg3[%c0, %c6, %c0_0], %0 {strides = array<i32>} : memref<4x25x19xf32, #tpu.memory_space<vmem>>, vector<4x2x19xf32>,
    %cst_1 = arith.constant 0.000000e+00 : f32
    %2 = vector.broadcast %cst_1 : f32 to vector<4x16x2xf32>
    %c0_2 = arith.constant 0 : index
    %c8 = arith.constant 8 : index
    %c0_3 = arith.constant 0 : index
    %3 = vector.load %arg3[%c0_2, %c8, %c0_3] : memref<4x25x19xf32, #tpu.memory_space<vmem>>, vector<4x16x2xf32>
    tpu.vector_store %arg3[%c0_2, %c8, %c0_3], %2 {strides = array<i32>} : memref<4x25x19xf32, #tpu.memory_space<vmem>>, vector<4x16x2xf32>,
    %cst_4 = arith.constant 0.000000e+00 : f32
    %4 = vector.broadcast %cst_4 : f32 to vector<4x1x19xf32>
    %c0_5 = arith.constant 0 : index
    %c24 = arith.constant 24 : index
    %c0_6 = arith.constant 0 : index
    %5 = vector.load %arg3[%c0_5, %c24, %c0_6] : memref<4x25x19xf32, #tpu.memory_space<vmem>>, vector<4x1x19xf32>
    tpu.vector_store %arg3[%c0_5, %c24, %c0_6], %4 {strides = array<i32>} : memref<4x25x19xf32, #tpu.memory_space<vmem>>, vector<4x1x19xf32>,
    %cst_7 = arith.constant 0.000000e+00 : f32
    %6 = vector.broadcast %cst_7 : f32 to vector<4x16x1xf32>
    %c0_8 = arith.constant 0 : index
    %c8_9 = arith.constant 8 : index
    %c18 = arith.constant 18 : index
    %7 = vector.load %arg3[%c0_8, %c8_9, %c18] : memref<4x25x19xf32, #tpu.memory_space<vmem>>, vector<4x16x1xf32>
    tpu.vector_store %arg3[%c0_8, %c8_9, %c18], %6 {strides = array<i32>} : memref<4x25x19xf32, #tpu.memory_space<vmem>>, vector<4x16x1xf32>,
    %c0_10 = arith.constant 0 : index
    %c0_11 = arith.constant 0 : index
    %c0_12 = arith.constant 0 : index
    %8 = vector.load %arg1[%c0_10, %c0_11, %c0_12] : memref<4x16x16xf32, #tpu.memory_space<vmem>>, vector<4x16x16xf32>
    %c0_13 = arith.constant 0 : index
    %c8_14 = arith.constant 8 : index
    %c2 = arith.constant 2 : index
    %9 = vector.load %arg3[%c0_13, %c8_14, %c2] : memref<4x25x19xf32, #tpu.memory_space<vmem>>, vector<4x16x16xf32>
    tpu.vector_store %arg3[%c0_13, %c8_14, %c2], %8 {strides = array<i32>} : memref<4x25x19xf32, #tpu.memory_space<vmem>>, vector<4x16x16xf32>,
    %c0_15 = arith.constant 0 : index
    %c6_16 = arith.constant 6 : index
    %c0_17 = arith.constant 0 : index
    %10 = vector.load %arg3[%c0_15, %c6_16, %c0_17] : memref<4x25x19xf32, #tpu.memory_space<vmem>>, vector<4x19x16xf32>
    %cst_18 = arith.constant 5.000000e-01 : f32
    %11 = vector.broadcast %cst_18 : f32 to vector<4x19x16xf32>
    %12 = arith.mulf %11, %10 : vector<4x19x16xf32>
    %c0_19 = arith.constant 0 : index
    %c6_20 = arith.constant 6 : index
    %c1 = arith.constant 1 : index
    %13 = vector.load %arg3[%c0_19, %c6_20, %c1] : memref<4x25x19xf32, #tpu.memory_space<vmem>>, vector<4x19x16xf32>
    %cst_21 = arith.constant 1.500000e+00 : f32
    %14 = vector.broadcast %cst_21 : f32 to vector<4x19x16xf32>
    %15 = arith.mulf %14, %13 : vector<4x19x16xf32>
    %16 = arith.addf %12, %15 : vector<4x19x16xf32>
    %c0_22 = arith.constant 0 : index
    %c6_23 = arith.constant 6 : index
    %c2_24 = arith.constant 2 : index
    %17 = vector.load %arg3[%c0_22, %c6_23, %c2_24] : memref<4x25x19xf32, #tpu.memory_space<vmem>>, vector<4x19x16xf32>
    %cst_25 = arith.constant 1.500000e+00 : f32
    %18 = vector.broadcast %cst_25 : f32 to vector<4x19x16xf32>
    %19 = arith.mulf %18, %17 : vector<4x19x16xf32>
    %20 = arith.addf %16, %19 : vector<4x19x16xf32>
    %c0_26 = arith.constant 0 : index
    %c6_27 = arith.constant 6 : index
    %c3 = arith.constant 3 : index
    %21 = vector.load %arg3[%c0_26, %c6_27, %c3] : memref<4x25x19xf32, #tpu.memory_space<vmem>>, vector<4x19x16xf32>
    %cst_28 = arith.constant 5.000000e-01 : f32
    %22 = vector.broadcast %cst_28 : f32 to vector<4x19x16xf32>
    %23 = arith.mulf %22, %21 : vector<4x19x16xf32>
    %24 = arith.addf %20, %23 : vector<4x19x16xf32>
    %25 = vector.extract_strided_slice %24 {offsets = [0, 0, 0], sizes = [4, 16, 16], strides = [1, 1, 1]} : vector<4x19x16xf32> to vector<4x16x16xf32>
    %cst_29 = arith.constant 1.250000e-01 : f32
    %26 = vector.broadcast %cst_29 : f32 to vector<4x16x16xf32>
    %27 = arith.mulf %26, %25 : vector<4x16x16xf32>
    %28 = vector.extract_strided_slice %24 {offsets = [0, 1, 0], sizes = [4, 16, 16], strides = [1, 1, 1]} : vector<4x19x16xf32> to vector<4x16x16xf32>
    %cst_30 = arith.constant 3.750000e-01 : f32
    %29 = vector.broadcast %cst_30 : f32 to vector<4x16x16xf32>
    %30 = arith.mulf %29, %28 : vector<4x16x16xf32>
    %31 = arith.addf %27, %30 : vector<4x16x16xf32>
    %32 = vector.extract_strided_slice %24 {offsets = [0, 2, 0], sizes = [4, 16, 16], strides = [1, 1, 1]} : vector<4x19x16xf32> to vector<4x16x16xf32>
    %cst_31 = arith.constant 3.750000e-01 : f32
    %33 = vector.broadcast %cst_31 : f32 to vector<4x16x16xf32>
    %34 = arith.mulf %33, %32 : vector<4x16x16xf32>
    %35 = arith.addf %31, %34 : vector<4x16x16xf32>
    %36 = vector.extract_strided_slice %24 {offsets = [0, 3, 0], sizes = [4, 16, 16], strides = [1, 1, 1]} : vector<4x19x16xf32> to vector<4x16x16xf32>
    %cst_32 = arith.constant 1.250000e-01 : f32
    %37 = vector.broadcast %cst_32 : f32 to vector<4x16x16xf32>
    %38 = arith.mulf %37, %36 : vector<4x16x16xf32>
    %39 = arith.addf %35, %38 : vector<4x16x16xf32>
    %c0_33 = arith.constant 0 : index
    %c0_34 = arith.constant 0 : index
    %c0_35 = arith.constant 0 : index
    %40 = vector.load %arg2[%c0_33, %c0_34, %c0_35] : memref<4x16x16xf32, #tpu.memory_space<vmem>>, vector<4x16x16xf32>
    tpu.vector_store %arg2[%c0_33, %c0_34, %c0_35], %39 {strides = array<i32>} : memref<4x16x16xf32, #tpu.memory_space<vmem>>, vector<4x16x16xf32>,
    return
  }
  func.func @transform_0(%arg0: i32) -> (i32, i32, i32) {
    %c0_i32 = arith.constant 0 : i32
    %c0_i32_0 = arith.constant 0 : i32
    %c0_i32_1 = arith.constant 0 : i32
    return %arg0, %c0_i32, %c0_i32_0 : i32, i32, i32
  }
  func.func @transform_1(%arg0: i32) -> (i32, i32, i32) {
    %c0_i32 = arith.constant 0 : i32
    %c0_i32_0 = arith.constant 0 : i32
    %c0_i32_1 = arith.constant 0 : i32
    return %arg0, %c0_i32, %c0_i32_0 : i32, i32, i32
  }
}

</mosaic_0001>

<llo_original>
// kernel: tpu_custom_call.1
$region0: #{tpu_custom_call.1}
  #allocation0 [shape = 'u32[]', space=smem, size = 0x4, offset = 0x4, fixed_abs, tag = 'smem constant byte address 0x4 - core index']
  #allocation1 [shape = 'u32[144,128]{1,0:T(1,128)}', space=vmem, size = 0x12000, scoped, tag = 'internal scratch']
  #allocation2 [shape = 'f32[4,25,19]{2,1,0:T(8,128)}', space=vmem, size = 0x10000, scoped, tag = 'scratch operand']
  %s0 = inlined_call_operand.hbm [shape: f32[8,16,16], index: 0, kind: input, shape index: {}]
  %s1 = inlined_call_operand.hbm [shape: f32[8,16,16], index: 1, kind: output, shape index: {}]
  %s2 = sld [smem:[#allocation0]]
  $region41: #{tpu_custom_call.1} parent=0
    _
  %s4 = ssub.s32 1, %s2
  %s5 = scalar_select 0, %s4, %s2
  $region1: #{tpu_custom_call.1} parent=0
    #allocation3 [shape = 'u8[65536]{0}', space=vmem, size = 0x10000, scoped, tag = 'input window, operand 0']
    #allocation4 [shape = 's32[2]{0}', space=sflag, size = 0x8, scoped, tag = 'scoped memory for tpu_custom_call.1']
    #allocation5 [shape = 's32[2]{0}', space=sflag, size = 0x8, scoped, tag = 'scoped memory for tpu_custom_call.1']
    #allocation6 [shape = 'u8[65536]{0}', space=vmem, size = 0x10000, scoped, tag = 'output window, operand 0']
    %6 = vsyncpa [#allocation4], 0
    %s7 = scalar_lea.sflag [#allocation4], 1
    %8 = vsyncpa %s7, 0
    %9 = vsyncpa [#allocation5], 0
    %s10 = scalar_lea.sflag [#allocation5], 1
    %11 = vsyncpa %s10, 0
    loop: start=0, step=1, limit=4
    $region2: #{tpu_custom_call.1} parent=1 // loop_pre_header
      _
    $region3: #{tpu_custom_call.1} parent=1 // loop_header
      %s13 = sphi 0, %s17
      %p14 = scmp.ge.s32.totalorder %s13, 4
      %s23 = sphi 0, %s25
      %s26 = sphi 0, %s23
      %s27 = sphi 0, %s26
      %s43 = sphi 0, %s27
      %s49 = sphi 0, %s51
      %s52 = sphi 0, %s49
      %s53 = sphi 0, %s52
      %s69 = sphi 0, %s53
    $region4: #{tpu_custom_call.1} parent=1 // loop_header_branch
      %16 = sbr.rel (%p14) target = $region8
    $region5: #{tpu_custom_call.1} parent=1 // loop_body
      %s18 = ssub.s32 %s13, 1
      %s19 = ssub.s32 %s13, 2
      %s20 = sadd.s32 %s13, 1
      %s21 = ssub.s32 %s13, %s20
      %p22 = scmp.eq.s32.totalorder %s21, 0
      %s24 = sadd.s32 %s23, 1
      %s25 = scalar_select %p22, %s23, %s24
      %p28 = pneg %p22
      %p29 = scmp.eq.s32.totalorder %s13, 1
      %p30 = por %p28, %p29
      %p31 = scmp.ne.s32.totalorder %s23, %s26
      %p32 = scmp.eq.s32.totalorder %s13, 0
      %p33 = por %p31, %p32
      %p34 = scmp.ne.s32.totalorder %s23, %s26
      %p35 = scmp.eq.s32.totalorder %s18, 1
      %p36 = por %p34, %p35
      %p37 = scmp.ne.s32.totalorder %s26, %s27
      %p38 = scmp.eq.s32.totalorder %s18, 0
      %p39 = por %p37, %p38
      %p40 = scmp.ne.s32.totalorder %s26, %s27
      %p41 = scmp.eq.s32.totalorder %s19, 1
      %p42 = por %p40, %p41
      %p44 = scmp.ne.s32.totalorder %s27, %s43
      %p45 = scmp.eq.s32.totalorder %s19, 0
      %p46 = por %p44, %p45
      %s47 = ssub.s32 %s13, %s20
      %p48 = scmp.eq.s32.totalorder %s47, 0
      %s50 = sadd.s32 %s49, 1
      %s51 = scalar_select %p48, %s49, %s50
      %p54 = pneg %p48
      %p55 = scmp.eq.s32.totalorder %s13, 1
      %p56 = por %p54, %p55
      %p57 = scmp.ne.s32.totalorder %s49, %s52
      %p58 = scmp.eq.s32.totalorder %s13, 0
      %p59 = por %p57, %p58
      %p60 = scmp.ne.s32.totalorder %s49, %s52
      %p61 = scmp.eq.s32.totalorder %s18, 1
      %p62 = por %p60, %p61
      %p63 = scmp.ne.s32.totalorder %s52, %s53
      %p64 = scmp.eq.s32.totalorder %s18, 0
      %p65 = por %p63, %p64
      %p66 = scmp.ne.s32.totalorder %s52, %s53
      %p67 = scmp.eq.s32.totalorder %s19, 1
      %p68 = por %p66, %p67
      %p70 = scmp.ne.s32.totalorder %s53, %s69
      %p71 = scmp.eq.s32.totalorder %s19, 0
      %p72 = por %p70, %p71
      %p73 = scmp.le.s32.totalorder 1, %s13
      %p74 = scmp.lt.s32.totalorder %s13, 3
      %p75 = pnand %p73, %p74
      %p76 = pneg %p75
      // Predicated region
      $region9: #{tpu_custom_call.1} parent=5 // pred_check
        _
      $region10: #{tpu_custom_call.1} parent=5 // pred_check_branch
        %78 = sbr.rel (%p75) target = $region12
      $region11: #{tpu_custom_call.1} parent=5 // pred_region
        %s79 = ssub.s32 %s13, 1
      $region12: #{tpu_custom_call.1} parent=5 // pred_fallthru
        _
      %p80 = scmp.lt.s32.totalorder %s13, 2
      // Predicated region
      $region13: #{tpu_custom_call.1} parent=5 // pred_check
        %p81 = pneg %p80
      $region14: #{tpu_custom_call.1} parent=5 // pred_check_branch
        %83 = sbr.rel (%p81) target = $region16
      $region15: #{tpu_custom_call.1} parent=5 // pred_region
        // Predicated region
        $region17: #{tpu_custom_call.1} parent=15 // pred_check
          %p84 = pneg %p33
        $region18: #{tpu_custom_call.1} parent=15 // pred_check_branch
          %86 = sbr.rel (%p84) target = $region20
        $region19: #{tpu_custom_call.1} parent=15 // pred_region
          %s87 = sand.u32 %s23, 1
          %s88 = scalar_lea.sflag [#allocation4], %s87
          %s89 = sand.u32 %s23, 1
          %s90 = smul.addr %s89, 64
          %s91 = scalar_lea.vmem [#allocation3], %s90
          %s92 = smul.u32 4, %s13
          %s94 = ssub.s32 1024, 1024
          %95 = vsyncadd %s88, %s94
          %s96 = smul.addr %s92, 2
          %s97 = smul.addr %s96, 128
          %s98 = scalar_lea.hbm %s0, %s97
          %s99 = sshll.u32 %s91, 4
          %s100 = int_to_ptr.vmem [resolvable:$true] %s99
          %105 = dma.hbm_to_vmem [thread:$0]  %s98, 1024, %s100, %s88, 128, 128, 8
        $region20: #{tpu_custom_call.1} parent=15 // pred_fallthru
          _
      $region16: #{tpu_custom_call.1} parent=5 // pred_fallthru
        _
      %p106 = scmp.le.s32.totalorder 1, %s13
      %p107 = scmp.lt.s32.totalorder %s13, 3
      %p108 = pnand %p106, %p107
      %p109 = pneg %p108
      // Predicated region
      $region21: #{tpu_custom_call.1} parent=5 // pred_check
        _
      $region22: #{tpu_custom_call.1} parent=5 // pred_check_branch
        %111 = sbr.rel (%p108) target = $region24
      $region23: #{tpu_custom_call.1} parent=5 // pred_region
        %s112 = ssub.s32 %s13, 1
        %s113 = sand.u32 %s26, 1
        %s114 = scalar_lea.sflag [#allocation4], %s113
        %s115 = sand.u32 %s26, 1
        %s116 = smul.addr %s115, 64
        %s117 = scalar_lea.vmem [#allocation3], %s116
        // Predicated region
        $region25: #{tpu_custom_call.1} parent=23 // pred_check
          %p118 = pneg %p39
        $region26: #{tpu_custom_call.1} parent=23 // pred_check_branch
          %120 = sbr.rel (%p118) target = $region28
        $region27: #{tpu_custom_call.1} parent=23 // pred_region
          %121 = dma.done %s114, 1024
        $region28: #{tpu_custom_call.1} parent=23 // pred_fallthru
          _
        %s122 = sand.u32 %s26, 1
        %s123 = scalar_lea.sflag [#allocation4], %s122
        %s124 = sand.u32 %s26, 1
        %s125 = smul.addr %s124, 64
        %s126 = scalar_lea.vmem [#allocation3], %s125
        %p127 = pneg %p39
        %p128 = pneg %p36
        %p129 = pneg %p65
        %p130 = pneg %p62
        %s131 = sand.u32 %s52, 1
        %s132 = scalar_lea.sflag [#allocation5], %s131
        %s133 = sand.u32 %s52, 1
        %s134 = smul.addr %s133, 64
        %s135 = scalar_lea.vmem [#allocation6], %s134
        %s136 = smul.u32 4, %s18
        %s137 = smul.u32 4, %s18
        %vm138 = vcmask 148480
        %139 = vst.msk [vmem:[#allocation2 + $0x6] sm:$0x3] %vm138, 0.0
        %140 = vst.msk [vmem:[#allocation2 + $0x26] sm:$0x3] %vm138, 0.0
        %141 = vst.msk [vmem:[#allocation2 + $0x46] sm:$0x3] %vm138, 0.0
        %142 = vst.msk [vmem:[#allocation2 + $0x66] sm:$0x3] %vm138, 0.0
        %vm143 = vcmask 15360
        %144 = vst.msk [vmem:[#allocation2 + $0x8] sm:$0xff] %vm143, 0.0
        %145 = vst.msk [vmem:[#allocation2 + $0x10] sm:$0xff] %vm143, 0.0
        %146 = vst.msk [vmem:[#allocation2 + $0x28] sm:$0xff] %vm143, 0.0
        %147 = vst.msk [vmem:[#allocation2 + $0x30] sm:$0xff] %vm143, 0.0
        %148 = vst.msk [vmem:[#allocation2 + $0x48] sm:$0xff] %vm143, 0.0
        %149 = vst.msk [vmem:[#allocation2 + $0x50] sm:$0xff] %vm143, 0.0
        %150 = vst.msk [vmem:[#allocation2 + $0x68] sm:$0xff] %vm143, 0.0
        %151 = vst.msk [vmem:[#allocation2 + $0x70] sm:$0xff] %vm143, 0.0
        %vm152 = vcmask 147456
        %153 = vst.msk [vmem:[#allocation2 + $0x18] sm:$0x1] %vm152, 0.0
        %154 = vst.msk [vmem:[#allocation2 + $0x38] sm:$0x1] %vm152, 0.0
        %155 = vst.msk [vmem:[#allocation2 + $0x58] sm:$0x1] %vm152, 0.0
        %156 = vst.msk [vmem:[#allocation2 + $0x78] sm:$0x1] %vm152, 0.0
        %vm157 = vcmask 154768
        %158 = vst.msk [vmem:[#allocation2 + $0x8] sm:$0xff] %vm157, 0.0
        %159 = vst.msk [vmem:[#allocation2 + $0x10] sm:$0xff] %vm157, 0.0
        %160 = vst.msk [vmem:[#allocation2 + $0x28] sm:$0xff] %vm157, 0.0
        %161 = vst.msk [vmem:[#allocation2 + $0x30] sm:$0xff] %vm157, 0.0
        %162 = vst.msk [vmem:[#allocation2 + $0x48] sm:$0xff] %vm157, 0.0
        %163 = vst.msk [vmem:[#allocation2 + $0x50] sm:$0xff] %vm157, 0.0
        %164 = vst.msk [vmem:[#allocation2 + $0x68] sm:$0xff] %vm157, 0.0
        %165 = vst.msk [vmem:[#allocation2 + $0x70] sm:$0xff] %vm157, 0.0
        %v166 = vld [vmem:[%s117] sm:$0xff]
        %v167 = vld [vmem:[%s117 + $0x8] sm:$0xff]
        %v168 = vld [vmem:[%s117 + $0x10] sm:$0xff]
        %v169 = vld [vmem:[%s117 + $0x18] sm:$0xff]
        %v170 = vld [vmem:[%s117 + $0x20] sm:$0xff]
        %v171 = vld [vmem:[%s117 + $0x28] sm:$0xff]
        %v172 = vld [vmem:[%s117 + $0x30] sm:$0xff]
        %v173 = vld [vmem:[%s117 + $0x38] sm:$0xff]
        %182 = vrot.lane.b32.xlu0 %v166, 2
        %v183 = vpop.permute.xlu0 %182
        %184 = vrot.lane.b32.xlu0 %v167, 2
        %v185 = vpop.permute.xlu0 %184
        %186 = vrot.lane.b32.xlu0 %v168, 2
        %v187 = vpop.permute.xlu0 %186
        %188 = vrot.lane.b32.xlu0 %v169, 2
        %v189 = vpop.permute.xlu0 %188
        %190 = vrot.lane.b32.xlu0 %v170, 2
        %v191 = vpop.permute.xlu0 %190
        %192 = vrot.lane.b32.xlu0 %v171, 2
        %v193 = vpop.permute.xlu0 %192
        %194 = vrot.lane.b32.xlu0 %v172, 2
        %v195 = vpop.permute.xlu0 %194
        %196 = vrot.lane.b32.xlu0 %v173, 2
        %v197 = vpop.permute.xlu0 %196
        %vm206 = vcmask 146448
        %207 = vst.msk [vmem:[#allocation2 + $0x8] sm:$0xff] %vm206, %v183
        %208 = vst.msk [vmem:[#allocation2 + $0x10] sm:$0xff] %vm206, %v185
        %209 = vst.msk [vmem:[#allocation2 + $0x28] sm:$0xff] %vm206, %v187
        %210 = vst.msk [vmem:[#allocation2 + $0x30] sm:$0xff] %vm206, %v189
        %211 = vst.msk [vmem:[#allocation2 + $0x48] sm:$0xff] %vm206, %v191
        %212 = vst.msk [vmem:[#allocation2 + $0x50] sm:$0xff] %vm206, %v193
        %213 = vst.msk [vmem:[#allocation2 + $0x68] sm:$0xff] %vm206, %v195
        %214 = vst.msk [vmem:[#allocation2 + $0x70] sm:$0xff] %vm206, %v197
        %v215 = vld [vmem:[#allocation2 + $0x6] sm:$0xff]
        %v216 = vld [vmem:[#allocation2 + $0xe] sm:$0xff]
        %v217 = vld [vmem:[#allocation2 + $0x16] sm:$0x7]
        %v218 = vld [vmem:[#allocation2 + $0x26] sm:$0xff]
        %v219 = vld [vmem:[#allocation2 + $0x2e] sm:$0xff]
        %v220 = vld [vmem:[#allocation2 + $0x36] sm:$0x7]
        %v221 = vld [vmem:[#allocation2 + $0x46] sm:$0xff]
        %v222 = vld [vmem:[#allocation2 + $0x4e] sm:$0xff]
        %v223 = vld [vmem:[#allocation2 + $0x56] sm:$0x7]
        %v224 = vld [vmem:[#allocation2 + $0x66] sm:$0xff]
        %v225 = vld [vmem:[#allocation2 + $0x6e] sm:$0xff]
        %v226 = vld [vmem:[#allocation2 + $0x76] sm:$0x7]
        %v227 = vmul.f32 %v215, 0.5
        %v228 = vmul.f32 %v216, 0.5
        %v229 = vmul.f32 %v217, 0.5
        %v230 = vmul.f32 %v218, 0.5
        %v231 = vmul.f32 %v219, 0.5
        %v232 = vmul.f32 %v220, 0.5
        %v233 = vmul.f32 %v221, 0.5
        %v234 = vmul.f32 %v222, 0.5
        %v235 = vmul.f32 %v223, 0.5
        %v236 = vmul.f32 %v224, 0.5
        %v237 = vmul.f32 %v225, 0.5
        %v238 = vmul.f32 %v226, 0.5
        %v239 = vmul.f32 %v215, 1.5
        %v240 = vmul.f32 %v216, 1.5
        %v241 = vmul.f32 %v217, 1.5
        %v242 = vmul.f32 %v218, 1.5
        %v243 = vmul.f32 %v219, 1.5
        %v244 = vmul.f32 %v220, 1.5
        %v245 = vmul.f32 %v221, 1.5
        %v246 = vmul.f32 %v222, 1.5
        %v247 = vmul.f32 %v223, 1.5
        %v248 = vmul.f32 %v224, 1.5
        %v249 = vmul.f32 %v225, 1.5
        %v250 = vmul.f32 %v226, 1.5
        %263 = vrot.lane.b32.xlu0 %v239, 127
        %v264 = vpop.permute.xlu0 %263
        %265 = vrot.lane.b32.xlu0 %v240, 127
        %v266 = vpop.permute.xlu0 %265
        %267 = vrot.lane.b32.xlu0 %v241, 127
        %v268 = vpop.permute.xlu0 %267
        %269 = vrot.lane.b32.xlu0 %v242, 127
        %v270 = vpop.permute.xlu0 %269
        %271 = vrot.lane.b32.xlu0 %v243, 127
        %v272 = vpop.permute.xlu0 %271
        %273 = vrot.lane.b32.xlu0 %v244, 127
        %v274 = vpop.permute.xlu0 %273
        %275 = vrot.lane.b32.xlu0 %v245, 127
        %v276 = vpop.permute.xlu0 %275
        %277 = vrot.lane.b32.xlu0 %v246, 127
        %v278 = vpop.permute.xlu0 %277
        %279 = vrot.lane.b32.xlu0 %v247, 127
        %v280 = vpop.permute.xlu0 %279
        %281 = vrot.lane.b32.xlu0 %v248, 127
        %v282 = vpop.permute.xlu0 %281
        %283 = vrot.lane.b32.xlu0 %v249, 127
        %v284 = vpop.permute.xlu0 %283
        %285 = vrot.lane.b32.xlu0 %v250, 127
        %v286 = vpop.permute.xlu0 %285
        %v299 = vadd.f32 %v227, %v264
        %v300 = vadd.f32 %v228, %v266
        %v301 = vadd.f32 %v229, %v268
        %v302 = vadd.f32 %v230, %v270
        %v303 = vadd.f32 %v231, %v272
        %v304 = vadd.f32 %v232, %v274
        %v305 = vadd.f32 %v233, %v276
        %v306 = vadd.f32 %v234, %v278
        %v307 = vadd.f32 %v235, %v280
        %v308 = vadd.f32 %v236, %v282
        %v309 = vadd.f32 %v237, %v284
        %v310 = vadd.f32 %v238, %v286
        %311 = vrot.lane.b32.xlu0 %v239, 126
        %v312 = vpop.permute.xlu0 %311
        %313 = vrot.lane.b32.xlu0 %v240, 126
        %v314 = vpop.permute.xlu0 %313
        %315 = vrot.lane.b32.xlu0 %v241, 126
        %v316 = vpop.permute.xlu0 %315
        %317 = vrot.lane.b32.xlu0 %v242, 126
        %v318 = vpop.permute.xlu0 %317
        %319 = vrot.lane.b32.xlu0 %v243, 126
        %v320 = vpop.permute.xlu0 %319
        %321 = vrot.lane.b32.xlu0 %v244, 126
        %v322 = vpop.permute.xlu0 %321
        %323 = vrot.lane.b32.xlu0 %v245, 126
        %v324 = vpop.permute.xlu0 %323
        %325 = vrot.lane.b32.xlu0 %v246, 126
        %v326 = vpop.permute.xlu0 %325
        %327 = vrot.lane.b32.xlu0 %v247, 126
        %v328 = vpop.permute.xlu0 %327
        %329 = vrot.lane.b32.xlu0 %v248, 126
        %v330 = vpop.permute.xlu0 %329
        %331 = vrot.lane.b32.xlu0 %v249, 126
        %v332 = vpop.permute.xlu0 %331
        %333 = vrot.lane.b32.xlu0 %v250, 126
        %v334 = vpop.permute.xlu0 %333
        %v347 = vadd.f32 %v299, %v312
        %v348 = vadd.f32 %v300, %v314
        %v349 = vadd.f32 %v301, %v316
        %v350 = vadd.f32 %v302, %v318
        %v351 = vadd.f32 %v303, %v320
        %v352 = vadd.f32 %v304, %v322
        %v353 = vadd.f32 %v305, %v324
        %v354 = vadd.f32 %v306, %v326
        %v355 = vadd.f32 %v307, %v328
        %v356 = vadd.f32 %v308, %v330
        %v357 = vadd.f32 %v309, %v332
        %v358 = vadd.f32 %v310, %v334
        %371 = vrot.lane.b32.xlu0 %v227, 125
        %v372 = vpop.permute.xlu0 %371
        %373 = vrot.lane.b32.xlu0 %v228, 125
        %v374 = vpop.permute.xlu0 %373
        %375 = vrot.lane.b32.xlu0 %v229, 125
        %v376 = vpop.permute.xlu0 %375
        %377 = vrot.lane.b32.xlu0 %v230, 125
        %v378 = vpop.permute.xlu0 %377
        %379 = vrot.lane.b32.xlu0 %v231, 125
        %v380 = vpop.permute.xlu0 %379
        %381 = vrot.lane.b32.xlu0 %v232, 125
        %v382 = vpop.permute.xlu0 %381
        %383 = vrot.lane.b32.xlu0 %v233, 125
        %v384 = vpop.permute.xlu0 %383
        %385 = vrot.lane.b32.xlu0 %v234, 125
        %v386 = vpop.permute.xlu0 %385
        %387 = vrot.lane.b32.xlu0 %v235, 125
        %v388 = vpop.permute.xlu0 %387
        %389 = vrot.lane.b32.xlu0 %v236, 125
        %v390 = vpop.permute.xlu0 %389
        %391 = vrot.lane.b32.xlu0 %v237, 125
        %v392 = vpop.permute.xlu0 %391
        %393 = vrot.lane.b32.xlu0 %v238, 125
        %v394 = vpop.permute.xlu0 %393
        %v407 = vadd.f32 %v347, %v372
        %v408 = vadd.f32 %v348, %v374
        %v409 = vadd.f32 %v349, %v376
        %v410 = vadd.f32 %v350, %v378
        %v411 = vadd.f32 %v351, %v380
        %v412 = vadd.f32 %v352, %v382
        %v413 = vadd.f32 %v353, %v384
        %v414 = vadd.f32 %v354, %v386
        %v415 = vadd.f32 %v355, %v388
        %v416 = vadd.f32 %v356, %v390
        %v417 = vadd.f32 %v357, %v392
        %v418 = vadd.f32 %v358, %v394
        %v419 = vmul.f32 %v407, 0.125
        %v420 = vmul.f32 %v408, 0.125
        %v421 = vmul.f32 %v410, 0.125
        %v422 = vmul.f32 %v411, 0.125
        %v423 = vmul.f32 %v413, 0.125
        %v424 = vmul.f32 %v414, 0.125
        %v425 = vmul.f32 %v416, 0.125
        %v426 = vmul.f32 %v417, 0.125
        %v427 = vmul.f32 %v407, 0.375
        %v428 = vmul.f32 %v408, 0.375
        %v429 = vmul.f32 %v409, 0.375
        %v430 = vmul.f32 %v410, 0.375
        %v431 = vmul.f32 %v411, 0.375
        %v432 = vmul.f32 %v412, 0.375
        %v433 = vmul.f32 %v413, 0.375
        %v434 = vmul.f32 %v414, 0.375
        %v435 = vmul.f32 %v415, 0.375
        %v436 = vmul.f32 %v416, 0.375
        %v437 = vmul.f32 %v417, 0.375
        %v438 = vmul.f32 %v418, 0.375
        %vm451 = vcmask 1046528
        %v452 = vrot.slane %v427, 1
        %v453 = vrot.slane %v428, 1
        %v454 = vsel %vm451, %v452, %v453
        %v455 = vrot.slane %v429, 1
        %v456 = vsel %vm451, %v453, %v455
        %v457 = vrot.slane %v430, 1
        %v458 = vrot.slane %v431, 1
        %v459 = vsel %vm451, %v457, %v458
        %v460 = vrot.slane %v432, 1
        %v461 = vsel %vm451, %v458, %v460
        %v462 = vrot.slane %v433, 1
        %v463 = vrot.slane %v434, 1
        %v464 = vsel %vm451, %v462, %v463
        %v465 = vrot.slane %v435, 1
        %v466 = vsel %vm451, %v463, %v465
        %v467 = vrot.slane %v436, 1
        %v468 = vrot.slane %v437, 1
        %v469 = vsel %vm451, %v467, %v468
        %v470 = vrot.slane %v438, 1
        %v471 = vsel %vm451, %v468, %v470
        %v480 = vadd.f32 %v419, %v454
        %v481 = vadd.f32 %v420, %v456
        %v482 = vadd.f32 %v421, %v459
        %v483 = vadd.f32 %v422, %v461
        %v484 = vadd.f32 %v423, %v464
        %v485 = vadd.f32 %v424, %v466
        %v486 = vadd.f32 %v425, %v469
        %v487 = vadd.f32 %v426, %v471
        %vm488 = vcmask 1045504
        %v489 = vrot.slane %v427, 2
        %v490 = vrot.slane %v428, 2
        %v491 = vsel %vm488, %v489, %v490
        %v492 = vrot.slane %v429, 2
        %v493 = vsel %vm488, %v490, %v492
        %v494 = vrot.slane %v430, 2
        %v495 = vrot.slane %v431, 2
        %v496 = vsel %vm488, %v494, %v495
        %v497 = vrot.slane %v432, 2
        %v498 = vsel %vm488, %v495, %v497
        %v499 = vrot.slane %v433, 2
        %v500 = vrot.slane %v434, 2
        %v501 = vsel %vm488, %v499, %v500
        %v502 = vrot.slane %v435, 2
        %v503 = vsel %vm488, %v500, %v502
        %v504 = vrot.slane %v436, 2
        %v505 = vrot.slane %v437, 2
        %v506 = vsel %vm488, %v504, %v505
        %v507 = vrot.slane %v438, 2
        %v508 = vsel %vm488, %v505, %v507
        %v517 = vadd.f32 %v480, %v491
        %v518 = vadd.f32 %v481, %v493
        %v519 = vadd.f32 %v482, %v496
        %v520 = vadd.f32 %v483, %v498
        %v521 = vadd.f32 %v484, %v501
        %v522 = vadd.f32 %v485, %v503
        %v523 = vadd.f32 %v486, %v506
        %v524 = vadd.f32 %v487, %v508
        %v525 = vmul.f32 %v409, 0.125
        %v526 = vmul.f32 %v412, 0.125
        %v527 = vmul.f32 %v415, 0.125
        %v528 = vmul.f32 %v418, 0.125
        %vm541 = vcmask 1044480
        %v542 = vrot.slane %v419, 3
        %v543 = vrot.slane %v420, 3
        %v544 = vsel %vm541, %v542, %v543
        %v545 = vrot.slane %v525, 3
        %v546 = vsel %vm541, %v543, %v545
        %v547 = vrot.slane %v421, 3
        %v548 = vrot.slane %v422, 3
        %v549 = vsel %vm541, %v547, %v548
        %v550 = vrot.slane %v526, 3
        %v551 = vsel %vm541, %v548, %v550
        %v552 = vrot.slane %v423, 3
        %v553 = vrot.slane %v424, 3
        %v554 = vsel %vm541, %v552, %v553
        %v555 = vrot.slane %v527, 3
        %v556 = vsel %vm541, %v553, %v555
        %v557 = vrot.slane %v425, 3
        %v558 = vrot.slane %v426, 3
        %v559 = vsel %vm541, %v557, %v558
        %v560 = vrot.slane %v528, 3
        %v561 = vsel %vm541, %v558, %v560
        %v570 = vadd.f32 %v517, %v544
        %v571 = vadd.f32 %v518, %v546
        %v572 = vadd.f32 %v519, %v549
        %v573 = vadd.f32 %v520, %v551
        %v574 = vadd.f32 %v521, %v554
        %v575 = vadd.f32 %v522, %v556
        %v576 = vadd.f32 %v523, %v559
        %v577 = vadd.f32 %v524, %v561
        %vm578 = vcmask 130048
        %579 = vst.msk [vmem:[%s135] sm:$0xff] %vm578, %v570
        %580 = vst.msk [vmem:[%s135 + $0x8] sm:$0xff] %vm578, %v571
        %581 = vst.msk [vmem:[%s135 + $0x10] sm:$0xff] %vm578, %v572
        %582 = vst.msk [vmem:[%s135 + $0x18] sm:$0xff] %vm578, %v573
        %583 = vst.msk [vmem:[%s135 + $0x20] sm:$0xff] %vm578, %v574
        %584 = vst.msk [vmem:[%s135 + $0x28] sm:$0xff] %vm578, %v575
        %585 = vst.msk [vmem:[%s135 + $0x30] sm:$0xff] %vm578, %v576
        %586 = vst.msk [vmem:[%s135 + $0x38] sm:$0xff] %vm578, %v577
        %s587 = sand.u32 %s52, 1
        %s588 = scalar_lea.sflag [#allocation5], %s587
        %s589 = sand.u32 %s52, 1
        %s590 = smul.addr %s589, 64
        %s591 = scalar_lea.vmem [#allocation6], %s590
        // Predicated region
        $region29: #{tpu_custom_call.1} parent=23 // pred_check
          %p592 = pneg %p62
        $region30: #{tpu_custom_call.1} parent=23 // pred_check_branch
          %594 = sbr.rel (%p592) target = $region32
        $region31: #{tpu_custom_call.1} parent=23 // pred_region
          %s595 = smul.u32 4, %s18
          %s597 = ssub.s32 1024, 1024
          %598 = vsyncadd %s588, %s597
          %s599 = smul.addr %s595, 2
          %s600 = smul.addr %s599, 128
          %s601 = scalar_lea.hbm %s1, %s600
          %s602 = sshll.u32 %s591, 4
          %s603 = int_to_ptr.vmem [resolvable:$true] %s602
          %608 = dma.vmem_to_hbm [thread:$0]  %s603, 1024, %s601, %s588, 128, 128, 8
        $region32: #{tpu_custom_call.1} parent=23 // pred_fallthru
          _
      $region24: #{tpu_custom_call.1} parent=5 // pred_fallthru
        _
      %p609 = scmp.le.s32.totalorder 2, %s13
      // Predicated region
      $region33: #{tpu_custom_call.1} parent=5 // pred_check
        %p610 = pneg %p609
      $region34: #{tpu_custom_call.1} parent=5 // pred_check_branch
        %612 = sbr.rel (%p610) target = $region36
      $region35: #{tpu_custom_call.1} parent=5 // pred_region
        %s613 = ssub.s32 %s13, 2
        // Predicated region
        $region37: #{tpu_custom_call.1} parent=35 // pred_check
          %p614 = pneg %p68
        $region38: #{tpu_custom_call.1} parent=35 // pred_check_branch
          %616 = sbr.rel (%p614) target = $region40
        $region39: #{tpu_custom_call.1} parent=35 // pred_region
          %s617 = sand.u32 %s53, 1
          %s618 = scalar_lea.sflag [#allocation5], %s617
          %s619 = sand.u32 %s53, 1
          %s620 = smul.addr %s619, 64
          %s621 = scalar_lea.vmem [#allocation6], %s620
          %622 = dma.done %s618, 1024
        $region40: #{tpu_custom_call.1} parent=35 // pred_fallthru
          _
      $region36: #{tpu_custom_call.1} parent=5 // pred_fallthru
        _
    $region6: #{tpu_custom_call.1} parent=1 // loop_footer
      %s17 = sadd.s32 1, %s13
    $region7: #{tpu_custom_call.1} parent=1 // loop_footer_branch
      %12 = sbr.rel target = $region3
    $region8: #{tpu_custom_call.1} parent=1 // loop_exit
      _
    %623 = vsyncpa [#allocation4], 1
    %s624 = scalar_lea.sflag [#allocation4], 1
    %625 = vsyncpa %s624, 1
    %626 = vsyncpa [#allocation5], 1
    %s627 = scalar_lea.sflag [#allocation5], 1
    %628 = vsyncpa %s627, 1

</llo_original>
